<compile_context>
chip_gen: v6e
topology: v6e:2x2x1
jax: 0.10.0
libtpu: 0.0.40
codegen_flags: <defaults>
</compile_context>

<pallas_src>
import functools

import jax
import jax.numpy as jnp
from jax.experimental import pallas as pl
from jax.experimental.pallas import tpu as pltpu


# --------------------------------------------------------------------------- #
# Prologue: row-wise L2 normalization (F.normalize(features, dim=1), eps=1e-12)
# --------------------------------------------------------------------------- #
def _l2_normalize_kernel(x_ref, o_ref):
    x = x_ref[...].astype(jnp.float32)
    ssq = jnp.sum(x * x, axis=1, keepdims=True)
    # x / max(||x||, 1e-12)  ==  x * rsqrt(max(||x||^2, 1e-24))  (EUP rsqrt)
    o_ref[...] = (x * jax.lax.rsqrt(jnp.maximum(ssq, 1e-24))).astype(o_ref.dtype)


# --------------------------------------------------------------------------- #
# Main kernel: one (C, TN) similarity tile + online-softmax accumulation
# --------------------------------------------------------------------------- #
def _infonce_kernel(qf_ref, kf_ref, cl_ref, fl_ref,                # inputs
                    loss_ref, valid_ref,                           # outputs
                    m_ref, d_ref, pos_sum_ref, pos_cnt_ref, self_sum_ref,
                    *, scale, chunk, key_tile, batch):
    i = pl.program_id(0)       # chunk (query-row) index
    kv = pl.program_id(1)      # key-column tile index
    C, TN = chunk, key_tile

    @pl.when(kv == 0)
    def _init():
        m_ref[...] = jnp.full((C, 1), -jnp.inf, jnp.float32)
        d_ref[...] = jnp.zeros((C, 1), jnp.float32)
        pos_sum_ref[...] = jnp.zeros((C, 1), jnp.float32)
        pos_cnt_ref[...] = jnp.zeros((C, 1), jnp.float32)
        self_sum_ref[...] = jnp.zeros((C, 1), jnp.float32)

    # Similarity tile on the MXU: contraction over the feature dim of both
    # operands (no materialized transpose); temperature folded into a multiply.
    sim = jax.lax.dot_general(
        qf_ref[...], kf_ref[...],
        dimension_numbers=(((1,), (1,)), ((), ())),
        preferred_element_type=jnp.float32) * scale                  # (C, TN)

    row = jax.lax.broadcasted_iota(jnp.int32, (C, TN), 0) + i * C    # global row
    col = jax.lax.broadcasted_iota(jnp.int32, (C, TN), 1) + kv * TN  # global col
    self_f = (col != row).astype(jnp.float32)                        # mask_self
    pos_f = (cl_ref[...] == fl_ref[...]).astype(jnp.float32) * self_f

    # Linear-in-sim statistics (independent of the softmax max).
    pos_sum_ref[...] += jnp.sum(pos_f * sim, axis=1, keepdims=True)
    pos_cnt_ref[...] += jnp.sum(pos_f, axis=1, keepdims=True)
    self_sum_ref[...] += jnp.sum(self_f * sim, axis=1, keepdims=True)

    # Online softmax denominator.  The row max is over the *unmasked* sims
    # (as in the reference); the exp clamp at 1e-8 is applied per tile against
    # the running max (negligible deviation from the single-pass reference).
    m_prev = m_ref[...]
    m_new = jnp.maximum(m_prev, jnp.max(sim, axis=1, keepdims=True))
    p = jnp.maximum(jnp.exp(sim - m_new), 1e-8) * self_f
    d_ref[...] = jnp.exp(m_prev - m_new) * d_ref[...] + jnp.sum(
        p, axis=1, keepdims=True)
    m_ref[...] = m_new

    @pl.when(kv == pl.num_programs(1) - 1)
    def _finalize():
        pos_cnt = pos_cnt_ref[...]
        # Chunk-level fallback: if there is no positive pair anywhere in this
        # chunk, use mask_self stats (torch: chunk_mask_pos = chunk_mask_self).
        any_pos = jnp.sum(pos_cnt) > 0.0
        self_cnt = jnp.full((C, 1), float(batch - 1), jnp.float32)
        cnt = jnp.where(any_pos, pos_cnt, self_cnt)
        msum = jnp.where(any_pos, pos_sum_ref[...], self_sum_ref[...])

        # -sum(mask * log_prob) = -sum(mask*sim) + cnt * (m + log(d + 1e-8))
        lse = m_ref[...] + jnp.log(d_ref[...] + 1e-8)
        per_row = -msum + cnt * lse                                  # (C, 1)
        valid = cnt > 0.0
        per_row = jnp.where(valid, per_row / jnp.maximum(cnt, 1.0), 0.0)
        valid_f = valid.astype(jnp.float32)

        # Lane-dense stores: convert (C, 1) columns to (1, C) rows with an
        # identity-masked sublane reduction (avoids an explicit relayout).
        eye = (jax.lax.broadcasted_iota(jnp.int32, (C, C), 0) ==
               jax.lax.broadcasted_iota(jnp.int32, (C, C), 1)).astype(jnp.float32)
        loss_ref[...] = jnp.sum(per_row * eye, axis=0,
                                keepdims=True).reshape(1, 1, C)
        valid_ref[...] = jnp.sum(valid_f * eye, axis=0,
                                 keepdims=True).reshape(1, 1, C)


# --------------------------------------------------------------------------- #
# Wrapper
# --------------------------------------------------------------------------- #
def _pick_key_tile(batch, cap):
    """Largest lane-friendly key tile that divides the batch."""
    if batch <= cap:
        return batch
    t = (cap // 128) * 128
    while t >= 128:
        if batch % t == 0:
            return t
        t -= 128
    return batch   # fallback: keep the whole key dim resident


def infonce_loss(features, labels=None, mask=None, *, temperature=0.07,
                 reduction="mean", chunk_size=256, key_tile=512,
                 use_bf16_matmul=True):
    """Pallas implementation of InfoNCELoss.forward (returns the same dict).

    `mask` is accepted for signature parity with the torch module, which never
    actually uses it.
    """
    del mask
    B, D = features.shape

    C = min(chunk_size, B)
    # TODO(synk): ragged final chunk (B % chunk_size != 0) would need tail masking.
    assert B % C == 0, "wrapper requires batch divisible by the chunk size"
    assert C == B or C % 8 == 0, "chunk tile must be sublane aligned"
    num_chunks = B // C
    TN = _pick_key_tile(B, key_tile)
    num_kv = B // TN

    mm_dtype = jnp.bfloat16 if use_bf16_matmul else jnp.float32

    # ---- prologue: normalize rows exactly once (native input dtype in) ----
    feats_n = pl.pallas_call(
        _l2_normalize_kernel,
        out_shape=jax.ShapeDtypeStruct((B, D), mm_dtype),
        grid_spec=pltpu.PrefetchScalarGridSpec(
            num_scalar_prefetch=0,
            grid=(num_chunks,),
            in_specs=[pl.BlockSpec((C, D), lambda i: (i, 0))],
            out_specs=pl.BlockSpec((C, D), lambda i: (i, 0)),
        ),
        compiler_params=pltpu.CompilerParams(
            dimension_semantics=("parallel",)),
    )(features)

    if labels is None:
        # arange labels -> positives mask is empty -> kernel falls back to
        # mask_self, matching the torch labels=None path exactly.
        labels = jnp.arange(B, dtype=jnp.int32)
    labels = labels.astype(jnp.int32).reshape(B)
    labels_col = labels.reshape(B, 1)   # chunk rows (sublane-major)
    labels_row = labels.reshape(1, B)   # key columns (lane-major)

    scale = 1.0 / max(float(temperature), 1e-4)
    kernel = functools.partial(_infonce_kernel, scale=scale, chunk=C,
                               key_tile=TN, batch=B)

    loss_rows, valid_rows = pl.pallas_call(
        kernel,
        out_shape=(jax.ShapeDtypeStruct((num_chunks, 1, C), jnp.float32),
                   jax.ShapeDtypeStruct((num_chunks, 1, C), jnp.float32)),
        grid_spec=pltpu.PrefetchScalarGridSpec(
            num_scalar_prefetch=0,
            grid=(num_chunks, num_kv),
            in_specs=[
                pl.BlockSpec((C, D), lambda i, k: (i, 0)),    # query chunk rows
                pl.BlockSpec((TN, D), lambda i, k: (k, 0)),   # key tile rows
                pl.BlockSpec((C, 1), lambda i, k: (i, 0)),    # chunk labels
                pl.BlockSpec((1, TN), lambda i, k: (0, k)),   # key labels (lane)
            ],
            out_specs=[
                pl.BlockSpec((1, 1, C), lambda i, k: (i, 0, 0)),  # per-row loss
                pl.BlockSpec((1, 1, C), lambda i, k: (i, 0, 0)),  # per-row valid
            ],
            scratch_shapes=[pltpu.VMEM((C, 1), jnp.float32)] * 5,
        ),
        compiler_params=pltpu.CompilerParams(
            dimension_semantics=("parallel", "arbitrary"),
            vmem_limit_bytes=32 * 1024 * 1024),
    )(feats_n, feats_n, labels_col, labels_row)

    total_loss = jnp.sum(loss_rows)
    total_pairs = jnp.sum(valid_rows)
    mean_loss = total_loss / (total_pairs + 1e-8)

    if reduction == "mean":
        loss = mean_loss
    elif reduction == "sum":
        # Matches the torch reference exactly (it also multiplies mean_loss by
        # total_pairs, re-introducing the +1e-8 denominator).
        loss = mean_loss * total_pairs
    else:
        loss = mean_loss

    # Reference never accumulates total_pos_sim / total_neg_sim -> always 0.
    avg_pos_sim = 0.0 / (total_pairs + 1e-8)
    avg_neg_sim = 0.0 / (total_pairs + 1e-8)

    return {
        "loss": loss,
        "positive_similarity": avg_pos_sim,
        "negative_similarity": avg_neg_sim,
        "num_pairs": total_pairs,
        "mean_loss": mean_loss,
    }


if __name__ == "__main__":
    key = jax.random.PRNGKey(0)
    kf, kl = jax.random.split(key)

    B, D = 8, 32  # small demo shapes; InfoNCE forward expects (batch, feat_dim)
    features = jax.random.normal(kf, (B, D), dtype=jnp.float32)
    labels = jax.random.randint(kl, (B,), 0, 4, dtype=jnp.int32)

    out = infonce_loss(features, labels, temperature=0.07,
                       reduction="mean", chunk_size=256)
    jax.block_until_ready(out["loss"])
    jax.block_until_ready(out["mean_loss"])

    # exercise the unsupervised (labels=None) path and the f32-parity path once
    out_unsup = infonce_loss(features, None)
    jax.block_until_ready(out_unsup["loss"])
    out_f32 = infonce_loss(features, labels, use_bf16_matmul=False)
    jax.block_until_ready(out_f32["loss"])

    print("KERNEL_OK")
</pallas_src>

<mosaic_0001>
module attributes {stable_mosaic.version = 11 : i64} {
  func.func @_l2_normalize_kernel(%arg0: i32, %arg1: memref<8x32xf32, #tpu.memory_space<vmem>>, %arg2: memref<8x32xbf16, #tpu.memory_space<vmem>>) attributes {dimension_semantics = [#tpu.dimension_semantics<parallel>], iteration_bounds = array<i64: 1>, scalar_prefetch = 0 : i64, scratch_operands = 0 : i64, tpu.core_type = #tpu.core_type<tc>, window_params = [{transform_indices = @transform_0, window_bounds = array<i64: 8, 32>}, {transform_indices = @transform_1, window_bounds = array<i64: 8, 32>}]} {
    %c0 = arith.constant 0 : index
    %c0_0 = arith.constant 0 : index
    %0 = vector.load %arg1[%c0, %c0_0] : memref<8x32xf32, #tpu.memory_space<vmem>>, vector<8x32xf32>
    %1 = arith.mulf %0, %0 : vector<8x32xf32>
    %cst = arith.constant dense<0.000000e+00> : vector<8xf32>
    %2 = vector.multi_reduction <add>, %1, %cst [1] : vector<8x32xf32> to vector<8xf32>
    %3 = vector.shape_cast %2 : vector<8xf32> to vector<8x1xf32>
    %cst_1 = arith.constant 1.000000e-24 : f32
    %4 = vector.broadcast %cst_1 : f32 to vector<8x1xf32>
    %5 = arith.maximumf %3, %4 : vector<8x1xf32>
    %6 = math.rsqrt %5 : vector<8x1xf32>
    %7 = vector.broadcast %6 : vector<8x1xf32> to vector<8x32xf32>
    %8 = arith.mulf %0, %7 : vector<8x32xf32>
    %9 = arith.truncf %8 : vector<8x32xf32> to vector<8x32xbf16>
    %c0_2 = arith.constant 0 : index
    %c0_3 = arith.constant 0 : index
    %10 = vector.load %arg2[%c0_2, %c0_3] : memref<8x32xbf16, #tpu.memory_space<vmem>>, vector<8x32xbf16>
    tpu.vector_store %arg2[%c0_2, %c0_3], %9 {strides = array<i32>} : memref<8x32xbf16, #tpu.memory_space<vmem>>, vector<8x32xbf16>,
    return
  }
  func.func @transform_0(%arg0: i32) -> (i32, i32) {
    %c0_i32 = arith.constant 0 : i32
    %c0_i32_0 = arith.constant 0 : i32
    return %arg0, %c0_i32 : i32, i32
  }
  func.func @transform_1(%arg0: i32) -> (i32, i32) {
    %c0_i32 = arith.constant 0 : i32
    %c0_i32_0 = arith.constant 0 : i32
    return %arg0, %c0_i32 : i32, i32
  }
}

</mosaic_0001>

<llo_original>
// kernel: tpu_custom_call.1
$region0: #{tpu_custom_call.1}
  #allocation0 [shape = 'u32[]', space=smem, size = 0x4, offset = 0x4, fixed_abs, tag = 'smem constant byte address 0x4 - core index']
  #allocation1 [shape = 'u32[144,128]{1,0:T(1,128)}', space=vmem, size = 0x12000, scoped, tag = 'internal scratch']
  %s0 = inlined_call_operand.hbm [shape: f32[8,32], index: 0, kind: input, shape index: {}]
  %s1 = inlined_call_operand.hbm [shape: bf16[8,32], index: 1, kind: output, shape index: {}]
  %s2 = sld [smem:[#allocation0]]
  $region18: #{tpu_custom_call.1} parent=0
    _
  %s4 = ssub.s32 1, %s2
  %s5 = scalar_select 0, %s4, %s2
  $region1: #{tpu_custom_call.1} parent=0
    #allocation2 [shape = 'u8[4096]{0}', space=vmem, size = 0x1000, scoped, tag = 'input window, operand 0, single buffered']
    #allocation3 [shape = 's32[1]{0}', space=sflag, size = 0x4, scoped, tag = 'scoped memory for tpu_custom_call.1']
    #allocation4 [shape = 's32[1]{0}', space=sflag, size = 0x4, scoped, tag = 'scoped memory for tpu_custom_call.1']
    #allocation5 [shape = 'u8[2048]{0}', space=vmem, size = 0x800, scoped, tag = 'output window, operand 0, single buffered']
    %6 = vsyncpa [#allocation3], 0
    %7 = vsyncpa [#allocation4], 0
    // Predicated region
    $region2: #{tpu_custom_call.1} parent=1 // pred_check
      _
    $region3: #{tpu_custom_call.1} parent=1 // pred_check_branch
      %9 = sbr.rel (0) target = $region5
    $region4: #{tpu_custom_call.1} parent=1 // pred_region
      %s11 = ssub.s32 128, 128
      %12 = vsyncadd [#allocation3], %s11
      %s14 = sshll.u32 [#allocation2], 4
      %s15 = int_to_ptr.vmem [resolvable:$true] %s14
      %17 = dma.hbm_to_vmem [thread:$0]  %s0, 128, %s15, [#allocation3]
    $region5: #{tpu_custom_call.1} parent=1 // pred_fallthru
      _
    // Predicated region
    $region6: #{tpu_custom_call.1} parent=1 // pred_check
      _
    $region7: #{tpu_custom_call.1} parent=1 // pred_check_branch
      %19 = sbr.rel (0) target = $region9
    $region8: #{tpu_custom_call.1} parent=1 // pred_region
      %20 = dma.done [#allocation3], 128
    $region9: #{tpu_custom_call.1} parent=1 // pred_fallthru
      _
    %v21 = vld [vmem:[#allocation2] sm:$0xff]
    %v22 = vmul.f32 %v21, %v21
    %vm23 = vcmask 261120
    %v24 = vsel %vm23, %v22, 0.0
    %25 = vadd.xlane.f32.xlu0 %v24
    %v26 = vpop.xlane.xlu0 %25
    %v27 = vmax.f32 %v26, 1e-24
    %v28 = vrsqrt.pop %v27
    %v29 = vmul.f32 %v21, %v28
    %v30 = vpack.c.bf16 %v29, %v29
    %vm31 = vcmask 257024
    %32 = vst.msk [vmem:[#allocation5] sm:$0xf] %vm31, %v30
    // Predicated region
    $region10: #{tpu_custom_call.1} parent=1 // pred_check
      _
    $region11: #{tpu_custom_call.1} parent=1 // pred_check_branch
      %34 = sbr.rel (0) target = $region13
    $region12: #{tpu_custom_call.1} parent=1 // pred_region
      %s36 = ssub.s32 64, 64
      %37 = vsyncadd [#allocation4], %s36
      %s39 = sshll.u32 [#allocation5], 4
      %s40 = int_to_ptr.vmem [resolvable:$true] %s39
      %42 = dma.vmem_to_hbm [thread:$0]  %s40, 64, %s1, [#allocation4]
    $region13: #{tpu_custom_call.1} parent=1 // pred_fallthru
      _
    // Predicated region
    $region14: #{tpu_custom_call.1} parent=1 // pred_check
      _
    $region15: #{tpu_custom_call.1} parent=1 // pred_check_branch
      %44 = sbr.rel (0) target = $region17
    $region16: #{tpu_custom_call.1} parent=1 // pred_region
      %45 = dma.done [#allocation4], 64
    $region17: #{tpu_custom_call.1} parent=1 // pred_fallthru
      _
    %46 = vsyncpa [#allocation3], 1
    %47 = vsyncpa [#allocation4], 1

</llo_original>
